<compile_context>
chip_gen: v5e
topology: v5e:2x2
jax: 0.10.0
libtpu: 0.0.40
codegen_flags: <defaults>
</compile_context>

<pallas_src>
import functools

import jax
import jax.numpy as jnp
from jax.experimental import pallas as pl
from jax.experimental.pallas import tpu as pltpu

IN_DIM = 7     # (t, x1, y1, x2, y2, x3, y3)
PAD_IN = 8     # input features padded to 8 lanes
HID = 128
OUT_DIM = 12
N_HID = 10     # number of hidden Linear(128,128) layers


def _round_up(n, m):
    return ((n + m - 1) // m) * m


def pinn_kernel(x_ref, w0_ref, b0_ref, wh_ref, bh_ref, wo_ref, bo_ref, o_ref):
    bf16 = jnp.bfloat16

    # First layer: (tm, 8) @ (8, 128) on the MXU, f32 accumulation.
    h = jnp.dot(x_ref[...].astype(bf16), w0_ref[...],
                preferred_element_type=jnp.float32)
    h = jnp.maximum(h + b0_ref[...], 0.0)

    # 10 hidden layers, statically unrolled (fixed trip count == 10).
    for l in range(N_HID):
        h = jnp.dot(h.astype(bf16), wh_ref[l],
                    preferred_element_type=jnp.float32)
        h = jnp.maximum(h + bh_ref[l], 0.0)

    # Output layer (no activation); lane-dense padded-to-128 output.
    o_ref[...] = jnp.dot(h.astype(bf16), wo_ref[...],
                         preferred_element_type=jnp.float32) + bo_ref[...]


def make_params(key):
    """PyTorch-style init (U(+/- 1/sqrt(fan_in))), packed into MXU-friendly
    shapes: weights pre-transposed to (in, out) and stored bf16, biases f32."""
    ks = jax.random.split(key, 2 * (N_HID + 2))

    def lin(kw, kb, fan_in, fan_out):
        bound = 1.0 / jnp.sqrt(fan_in)
        w = jax.random.uniform(kw, (fan_in, fan_out), jnp.float32, -bound, bound)
        b = jax.random.uniform(kb, (fan_out,), jnp.float32, -bound, bound)
        return w, b

    # layer 0: 7 -> 128, input dim padded to 8 (one zero row).
    w0_raw, b0_raw = lin(ks[0], ks[1], IN_DIM, HID)
    w0 = jnp.zeros((PAD_IN, HID), jnp.float32).at[:IN_DIM, :].set(w0_raw)
    b0 = b0_raw.reshape(1, HID)

    # 10 hidden layers: 128 -> 128, stacked.
    wh_list, bh_list = [], []
    for l in range(N_HID):
        w, b = lin(ks[2 + 2 * l], ks[3 + 2 * l], HID, HID)
        wh_list.append(w)
        bh_list.append(b.reshape(1, HID))
    wh = jnp.stack(wh_list, axis=0)            # (10, 128, 128)
    bh = jnp.stack(bh_list, axis=0)            # (10, 1, 128)

    # output layer: 128 -> 12, output dim padded to 128 with zero cols.
    wo_raw, bo_raw = lin(ks[2 * N_HID + 2], ks[2 * N_HID + 3], HID, OUT_DIM)
    wo = jnp.zeros((HID, HID), jnp.float32).at[:, :OUT_DIM].set(wo_raw)
    bo = jnp.zeros((1, HID), jnp.float32).at[0, :OUT_DIM].set(bo_raw)

    params = (w0.astype(jnp.bfloat16), b0,
              wh.astype(jnp.bfloat16), bh,
              wo.astype(jnp.bfloat16), bo)
    raw = dict(w0=w0_raw, b0=b0_raw, wh=wh_list,
               bh=[b.reshape(HID) for b in bh_list], wo=wo_raw, bo=bo_raw)
    return params, raw


@functools.partial(jax.jit, static_argnames=("tm",))
def pinn_forward(x, params, tm=512):
    """x: (B, 7) float32  ->  (B, 12) float32."""
    B = x.shape[0]
    w0, b0, wh, bh, wo, bo = params

    # Cap the batch tile for small inputs; keep it a multiple of 8 sublanes.
    tm_eff = min(tm, _round_up(B, 8))
    b_pad = _round_up(B, tm_eff)
    grid_m = b_pad // tm_eff

    # Pad features 7 -> 8 lanes and batch B -> b_pad rows (zero rows are inert).
    x_p = jnp.zeros((b_pad, PAD_IN), jnp.float32).at[:B, :IN_DIM].set(x)

    # Advisory cost estimate so XLA schedules around the custom call sensibly.
    flops = 2 * b_pad * (PAD_IN * HID + N_HID * HID * HID + HID * HID)
    bytes_accessed = (x_p.size * 4 + b_pad * HID * 4            # in / out
                      + (w0.size + wh.size + wo.size) * 2       # bf16 weights
                      + (b0.size + bh.size + bo.size) * 4)      # f32 biases
    cost = pl.CostEstimate(flops=flops, transcendentals=0,
                           bytes_accessed=bytes_accessed)

    out_pad = pl.pallas_call(
        pinn_kernel,
        out_shape=jax.ShapeDtypeStruct((b_pad, HID), jnp.float32),
        grid_spec=pltpu.PrefetchScalarGridSpec(
            num_scalar_prefetch=0,
            grid=(grid_m,),
            in_specs=[
                pl.BlockSpec((tm_eff, PAD_IN), lambda i: (i, 0)),       # x tile (f32)
                pl.BlockSpec((PAD_IN, HID), lambda i: (0, 0)),          # w0 (bf16)
                pl.BlockSpec((1, HID), lambda i: (0, 0)),               # b0 (f32)
                pl.BlockSpec((N_HID, HID, HID), lambda i: (0, 0, 0)),   # wh (bf16)
                pl.BlockSpec((N_HID, 1, HID), lambda i: (0, 0, 0)),     # bh (f32)
                pl.BlockSpec((HID, HID), lambda i: (0, 0)),             # wo (bf16)
                pl.BlockSpec((1, HID), lambda i: (0, 0)),               # bo (f32)
            ],
            out_specs=pl.BlockSpec((tm_eff, HID), lambda i: (i, 0)),
        ),
        compiler_params=pltpu.CompilerParams(
            dimension_semantics=("parallel",)),
        cost_estimate=cost,
    )(x_p, w0, b0, wh, bh, wo, bo)

    return out_pad[:B, :OUT_DIM]


def pinn_reference_matched(x, params):
    """Plain-JAX reference with the SAME numerics as the kernel
    (bf16 matmul inputs, f32 accumulation, f32 bias/ReLU)."""
    bf16 = jnp.bfloat16
    w0, b0, wh, bh, wo, bo = params
    xb = jnp.zeros((x.shape[0], PAD_IN), jnp.float32).at[:, :IN_DIM].set(x)
    h = jnp.dot(xb.astype(bf16), w0, preferred_element_type=jnp.float32) + b0
    h = jnp.maximum(h, 0.0)
    for l in range(N_HID):
        h = jnp.dot(h.astype(bf16), wh[l], preferred_element_type=jnp.float32) + bh[l]
        h = jnp.maximum(h, 0.0)
    out = jnp.dot(h.astype(bf16), wo, preferred_element_type=jnp.float32) + bo
    return out[:, :OUT_DIM]


def pinn_reference_f32(x, raw):
    """Pure-f32 reference of the PyTorch forward."""
    h = jnp.maximum(x @ raw["w0"] + raw["b0"], 0.0)
    for w, b in zip(raw["wh"], raw["bh"]):
        h = jnp.maximum(h @ w + b, 0.0)
    return h @ raw["wo"] + raw["bo"]


if __name__ == "__main__":
    key = jax.random.PRNGKey(0)
    k_param, k_x = jax.random.split(key)

    params, raw = make_params(k_param)

    B = 30  # small batch of 7-feature collocation points; exercises batch padding
    x = jax.random.normal(k_x, (B, IN_DIM), jnp.float32)

    # Default large tile (capped to the small batch) ...
    y = jax.block_until_ready(pinn_forward(x, params))
    # ... and an explicit small tile that exercises a multi-step grid + padding.
    y_small_tile = jax.block_until_ready(pinn_forward(x, params, tm=16))

    assert y.shape == (B, OUT_DIM)

    # Tight check vs the precision-matched reference.
    y_match = pinn_reference_matched(x, params)
    assert jnp.allclose(y, y_match, atol=2e-3, rtol=2e-3), "mismatch vs matched ref"
    assert jnp.allclose(y_small_tile, y, atol=2e-3, rtol=2e-3), "tile-size dependence"

    # Loose sanity check vs the pure-f32 PyTorch-equivalent forward
    # (bf16-weight matmuls approximate the f32 model).
    y_f32 = pinn_reference_f32(x, raw)
    assert float(jnp.max(jnp.abs(y - y_f32))) < 5e-2, "bf16 matmul drifted from f32"

    print("KERNEL_OK")
</pallas_src>

<mosaic_0001>
module attributes {stable_mosaic.version = 11 : i64} {
  func.func @pinn_kernel(%arg0: i32, %arg1: memref<32x8xf32, #tpu.memory_space<vmem>>, %arg2: memref<8x128xbf16, #tpu.memory_space<vmem>>, %arg3: memref<1x128xf32, #tpu.memory_space<vmem>>, %arg4: memref<10x128x128xbf16, #tpu.memory_space<vmem>>, %arg5: memref<10x1x128xf32, #tpu.memory_space<vmem>>, %arg6: memref<128x128xbf16, #tpu.memory_space<vmem>>, %arg7: memref<1x128xf32, #tpu.memory_space<vmem>>, %arg8: memref<32x128xf32, #tpu.memory_space<vmem>>) attributes {dimension_semantics = [#tpu.dimension_semantics<parallel>], iteration_bounds = array<i64: 1>, scalar_prefetch = 0 : i64, scratch_operands = 0 : i64, tpu.core_type = #tpu.core_type<tc>, window_params = [{transform_indices = @transform_0, window_bounds = array<i64: 32, 8>}, {pipeline_mode = #tpu.pipeline_mode<synchronous>, transform_indices = @transform_1, window_bounds = array<i64: 8, 128>}, {pipeline_mode = #tpu.pipeline_mode<synchronous>, transform_indices = @transform_2, window_bounds = array<i64: 1, 128>}, {pipeline_mode = #tpu.pipeline_mode<synchronous>, transform_indices = @transform_3, window_bounds = array<i64: 10, 128, 128>}, {pipeline_mode = #tpu.pipeline_mode<synchronous>, transform_indices = @transform_4, window_bounds = array<i64: 10, 1, 128>}, {pipeline_mode = #tpu.pipeline_mode<synchronous>, transform_indices = @transform_5, window_bounds = array<i64: 128, 128>}, {pipeline_mode = #tpu.pipeline_mode<synchronous>, transform_indices = @transform_6, window_bounds = array<i64: 1, 128>}, {transform_indices = @transform_7, window_bounds = array<i64: 32, 128>}]} {
    %c0 = arith.constant 0 : index
    %c0_0 = arith.constant 0 : index
    %0 = vector.load %arg1[%c0, %c0_0] : memref<32x8xf32, #tpu.memory_space<vmem>>, vector<32x8xf32>
    %1 = arith.truncf %0 : vector<32x8xf32> to vector<32x8xbf16>
    %c0_1 = arith.constant 0 : index
    %c0_2 = arith.constant 0 : index
    %2 = vector.load %arg2[%c0_1, %c0_2] : memref<8x128xbf16, #tpu.memory_space<vmem>>, vector<8x128xbf16>
    %cst = arith.constant dense<0.000000e+00> : vector<32x128xf32>
    %3 = tpu.matmul %1, %2, %cst {dimension_numbers = #tpu.dot_dimension_numbers<[1], [0], [0], [1], [0, 0, 1, 1], [], []>} : vector<32x8xbf16>, vector<8x128xbf16>, vector<32x128xf32> -> vector<32x128xf32>
    %c0_3 = arith.constant 0 : index
    %c0_4 = arith.constant 0 : index
    %4 = vector.load %arg3[%c0_3, %c0_4] : memref<1x128xf32, #tpu.memory_space<vmem>>, vector<1x128xf32>
    %5 = vector.broadcast %4 : vector<1x128xf32> to vector<32x128xf32>
    %6 = arith.addf %3, %5 : vector<32x128xf32>
    %cst_5 = arith.constant 0.000000e+00 : f32
    %7 = vector.broadcast %cst_5 : f32 to vector<32x128xf32>
    %8 = arith.maximumf %6, %7 : vector<32x128xf32>
    %9 = arith.truncf %8 : vector<32x128xf32> to vector<32x128xbf16>
    %c0_6 = arith.constant 0 : index
    %c0_7 = arith.constant 0 : index
    %c0_8 = arith.constant 0 : index
    %10 = vector.load %arg4[%c0_6, %c0_7, %c0_8] : memref<10x128x128xbf16, #tpu.memory_space<vmem>>, vector<1x128x128xbf16>
    %11 = vector.shape_cast %10 : vector<1x128x128xbf16> to vector<128x128xbf16>
    %cst_9 = arith.constant dense<0.000000e+00> : vector<32x128xf32>
    %12 = tpu.matmul %9, %11, %cst_9 {dimension_numbers = #tpu.dot_dimension_numbers<[1], [0], [0], [1], [0, 0, 1, 1], [], []>} : vector<32x128xbf16>, vector<128x128xbf16>, vector<32x128xf32> -> vector<32x128xf32>
    %c0_10 = arith.constant 0 : index
    %c0_11 = arith.constant 0 : index
    %c0_12 = arith.constant 0 : index
    %13 = vector.load %arg5[%c0_10, %c0_11, %c0_12] : memref<10x1x128xf32, #tpu.memory_space<vmem>>, vector<1x1x128xf32>
    %14 = vector.shape_cast %13 : vector<1x1x128xf32> to vector<1x128xf32>
    %15 = vector.broadcast %14 : vector<1x128xf32> to vector<32x128xf32>
    %16 = arith.addf %12, %15 : vector<32x128xf32>
    %cst_13 = arith.constant 0.000000e+00 : f32
    %17 = vector.broadcast %cst_13 : f32 to vector<32x128xf32>
    %18 = arith.maximumf %16, %17 : vector<32x128xf32>
    %19 = arith.truncf %18 : vector<32x128xf32> to vector<32x128xbf16>
    %c1 = arith.constant 1 : index
    %c0_14 = arith.constant 0 : index
    %c0_15 = arith.constant 0 : index
    %20 = vector.load %arg4[%c1, %c0_14, %c0_15] : memref<10x128x128xbf16, #tpu.memory_space<vmem>>, vector<1x128x128xbf16>
    %21 = vector.shape_cast %20 : vector<1x128x128xbf16> to vector<128x128xbf16>
    %cst_16 = arith.constant dense<0.000000e+00> : vector<32x128xf32>
    %22 = tpu.matmul %19, %21, %cst_16 {dimension_numbers = #tpu.dot_dimension_numbers<[1], [0], [0], [1], [0, 0, 1, 1], [], []>} : vector<32x128xbf16>, vector<128x128xbf16>, vector<32x128xf32> -> vector<32x128xf32>
    %c1_17 = arith.constant 1 : index
    %c0_18 = arith.constant 0 : index
    %c0_19 = arith.constant 0 : index
    %23 = vector.load %arg5[%c1_17, %c0_18, %c0_19] : memref<10x1x128xf32, #tpu.memory_space<vmem>>, vector<1x1x128xf32>
    %24 = vector.shape_cast %23 : vector<1x1x128xf32> to vector<1x128xf32>
    %25 = vector.broadcast %24 : vector<1x128xf32> to vector<32x128xf32>
    %26 = arith.addf %22, %25 : vector<32x128xf32>
    %cst_20 = arith.constant 0.000000e+00 : f32
    %27 = vector.broadcast %cst_20 : f32 to vector<32x128xf32>
    %28 = arith.maximumf %26, %27 : vector<32x128xf32>
    %29 = arith.truncf %28 : vector<32x128xf32> to vector<32x128xbf16>
    %c2 = arith.constant 2 : index
    %c0_21 = arith.constant 0 : index
    %c0_22 = arith.constant 0 : index
    %30 = vector.load %arg4[%c2, %c0_21, %c0_22] : memref<10x128x128xbf16, #tpu.memory_space<vmem>>, vector<1x128x128xbf16>
    %31 = vector.shape_cast %30 : vector<1x128x128xbf16> to vector<128x128xbf16>
    %cst_23 = arith.constant dense<0.000000e+00> : vector<32x128xf32>
    %32 = tpu.matmul %29, %31, %cst_23 {dimension_numbers = #tpu.dot_dimension_numbers<[1], [0], [0], [1], [0, 0, 1, 1], [], []>} : vector<32x128xbf16>, vector<128x128xbf16>, vector<32x128xf32> -> vector<32x128xf32>
    %c2_24 = arith.constant 2 : index
    %c0_25 = arith.constant 0 : index
    %c0_26 = arith.constant 0 : index
    %33 = vector.load %arg5[%c2_24, %c0_25, %c0_26] : memref<10x1x128xf32, #tpu.memory_space<vmem>>, vector<1x1x128xf32>
    %34 = vector.shape_cast %33 : vector<1x1x128xf32> to vector<1x128xf32>
    %35 = vector.broadcast %34 : vector<1x128xf32> to vector<32x128xf32>
    %36 = arith.addf %32, %35 : vector<32x128xf32>
    %cst_27 = arith.constant 0.000000e+00 : f32
    %37 = vector.broadcast %cst_27 : f32 to vector<32x128xf32>
    %38 = arith.maximumf %36, %37 : vector<32x128xf32>
    %39 = arith.truncf %38 : vector<32x128xf32> to vector<32x128xbf16>
    %c3 = arith.constant 3 : index
    %c0_28 = arith.constant 0 : index
    %c0_29 = arith.constant 0 : index
    %40 = vector.load %arg4[%c3, %c0_28, %c0_29] : memref<10x128x128xbf16, #tpu.memory_space<vmem>>, vector<1x128x128xbf16>
    %41 = vector.shape_cast %40 : vector<1x128x128xbf16> to vector<128x128xbf16>
    %cst_30 = arith.constant dense<0.000000e+00> : vector<32x128xf32>
    %42 = tpu.matmul %39, %41, %cst_30 {dimension_numbers = #tpu.dot_dimension_numbers<[1], [0], [0], [1], [0, 0, 1, 1], [], []>} : vector<32x128xbf16>, vector<128x128xbf16>, vector<32x128xf32> -> vector<32x128xf32>
    %c3_31 = arith.constant 3 : index
    %c0_32 = arith.constant 0 : index
    %c0_33 = arith.constant 0 : index
    %43 = vector.load %arg5[%c3_31, %c0_32, %c0_33] : memref<10x1x128xf32, #tpu.memory_space<vmem>>, vector<1x1x128xf32>
    %44 = vector.shape_cast %43 : vector<1x1x128xf32> to vector<1x128xf32>
    %45 = vector.broadcast %44 : vector<1x128xf32> to vector<32x128xf32>
    %46 = arith.addf %42, %45 : vector<32x128xf32>
    %cst_34 = arith.constant 0.000000e+00 : f32
    %47 = vector.broadcast %cst_34 : f32 to vector<32x128xf32>
    %48 = arith.maximumf %46, %47 : vector<32x128xf32>
    %49 = arith.truncf %48 : vector<32x128xf32> to vector<32x128xbf16>
    %c4 = arith.constant 4 : index
    %c0_35 = arith.constant 0 : index
    %c0_36 = arith.constant 0 : index
    %50 = vector.load %arg4[%c4, %c0_35, %c0_36] : memref<10x128x128xbf16, #tpu.memory_space<vmem>>, vector<1x128x128xbf16>
    %51 = vector.shape_cast %50 : vector<1x128x128xbf16> to vector<128x128xbf16>
    %cst_37 = arith.constant dense<0.000000e+00> : vector<32x128xf32>
    %52 = tpu.matmul %49, %51, %cst_37 {dimension_numbers = #tpu.dot_dimension_numbers<[1], [0], [0], [1], [0, 0, 1, 1], [], []>} : vector<32x128xbf16>, vector<128x128xbf16>, vector<32x128xf32> -> vector<32x128xf32>
    %c4_38 = arith.constant 4 : index
    %c0_39 = arith.constant 0 : index
    %c0_40 = arith.constant 0 : index
    %53 = vector.load %arg5[%c4_38, %c0_39, %c0_40] : memref<10x1x128xf32, #tpu.memory_space<vmem>>, vector<1x1x128xf32>
    %54 = vector.shape_cast %53 : vector<1x1x128xf32> to vector<1x128xf32>
    %55 = vector.broadcast %54 : vector<1x128xf32> to vector<32x128xf32>
    %56 = arith.addf %52, %55 : vector<32x128xf32>
    %cst_41 = arith.constant 0.000000e+00 : f32
    %57 = vector.broadcast %cst_41 : f32 to vector<32x128xf32>
    %58 = arith.maximumf %56, %57 : vector<32x128xf32>
    %59 = arith.truncf %58 : vector<32x128xf32> to vector<32x128xbf16>
    %c5 = arith.constant 5 : index
    %c0_42 = arith.constant 0 : index
    %c0_43 = arith.constant 0 : index
    %60 = vector.load %arg4[%c5, %c0_42, %c0_43] : memref<10x128x128xbf16, #tpu.memory_space<vmem>>, vector<1x128x128xbf16>
    %61 = vector.shape_cast %60 : vector<1x128x128xbf16> to vector<128x128xbf16>
    %cst_44 = arith.constant dense<0.000000e+00> : vector<32x128xf32>
    %62 = tpu.matmul %59, %61, %cst_44 {dimension_numbers = #tpu.dot_dimension_numbers<[1], [0], [0], [1], [0, 0, 1, 1], [], []>} : vector<32x128xbf16>, vector<128x128xbf16>, vector<32x128xf32> -> vector<32x128xf32>
    %c5_45 = arith.constant 5 : index
    %c0_46 = arith.constant 0 : index
    %c0_47 = arith.constant 0 : index
    %63 = vector.load %arg5[%c5_45, %c0_46, %c0_47] : memref<10x1x128xf32, #tpu.memory_space<vmem>>, vector<1x1x128xf32>
    %64 = vector.shape_cast %63 : vector<1x1x128xf32> to vector<1x128xf32>
    %65 = vector.broadcast %64 : vector<1x128xf32> to vector<32x128xf32>
    %66 = arith.addf %62, %65 : vector<32x128xf32>
    %cst_48 = arith.constant 0.000000e+00 : f32
    %67 = vector.broadcast %cst_48 : f32 to vector<32x128xf32>
    %68 = arith.maximumf %66, %67 : vector<32x128xf32>
    %69 = arith.truncf %68 : vector<32x128xf32> to vector<32x128xbf16>
    %c6 = arith.constant 6 : index
    %c0_49 = arith.constant 0 : index
    %c0_50 = arith.constant 0 : index
    %70 = vector.load %arg4[%c6, %c0_49, %c0_50] : memref<10x128x128xbf16, #tpu.memory_space<vmem>>, vector<1x128x128xbf16>
    %71 = vector.shape_cast %70 : vector<1x128x128xbf16> to vector<128x128xbf16>
    %cst_51 = arith.constant dense<0.000000e+00> : vector<32x128xf32>
    %72 = tpu.matmul %69, %71, %cst_51 {dimension_numbers = #tpu.dot_dimension_numbers<[1], [0], [0], [1], [0, 0, 1, 1], [], []>} : vector<32x128xbf16>, vector<128x128xbf16>, vector<32x128xf32> -> vector<32x128xf32>
    %c6_52 = arith.constant 6 : index
    %c0_53 = arith.constant 0 : index
    %c0_54 = arith.constant 0 : index
    %73 = vector.load %arg5[%c6_52, %c0_53, %c0_54] : memref<10x1x128xf32, #tpu.memory_space<vmem>>, vector<1x1x128xf32>
    %74 = vector.shape_cast %73 : vector<1x1x128xf32> to vector<1x128xf32>
    %75 = vector.broadcast %74 : vector<1x128xf32> to vector<32x128xf32>
    %76 = arith.addf %72, %75 : vector<32x128xf32>
    %cst_55 = arith.constant 0.000000e+00 : f32
    %77 = vector.broadcast %cst_55 : f32 to vector<32x128xf32>
    %78 = arith.maximumf %76, %77 : vector<32x128xf32>
    %79 = arith.truncf %78 : vector<32x128xf32> to vector<32x128xbf16>
    %c7 = arith.constant 7 : index
    %c0_56 = arith.constant 0 : index
    %c0_57 = arith.constant 0 : index
    %80 = vector.load %arg4[%c7, %c0_56, %c0_57] : memref<10x128x128xbf16, #tpu.memory_space<vmem>>, vector<1x128x128xbf16>
    %81 = vector.shape_cast %80 : vector<1x128x128xbf16> to vector<128x128xbf16>
    %cst_58 = arith.constant dense<0.000000e+00> : vector<32x128xf32>
    %82 = tpu.matmul %79, %81, %cst_58 {dimension_numbers = #tpu.dot_dimension_numbers<[1], [0], [0], [1], [0, 0, 1, 1], [], []>} : vector<32x128xbf16>, vector<128x128xbf16>, vector<32x128xf32> -> vector<32x128xf32>
    %c7_59 = arith.constant 7 : index
    %c0_60 = arith.constant 0 : index
    %c0_61 = arith.constant 0 : index
    %83 = vector.load %arg5[%c7_59, %c0_60, %c0_61] : memref<10x1x128xf32, #tpu.memory_space<vmem>>, vector<1x1x128xf32>
    %84 = vector.shape_cast %83 : vector<1x1x128xf32> to vector<1x128xf32>
    %85 = vector.broadcast %84 : vector<1x128xf32> to vector<32x128xf32>
    %86 = arith.addf %82, %85 : vector<32x128xf32>
    %cst_62 = arith.constant 0.000000e+00 : f32
    %87 = vector.broadcast %cst_62 : f32 to vector<32x128xf32>
    %88 = arith.maximumf %86, %87 : vector<32x128xf32>
    %89 = arith.truncf %88 : vector<32x128xf32> to vector<32x128xbf16>
    %c8 = arith.constant 8 : index
    %c0_63 = arith.constant 0 : index
    %c0_64 = arith.constant 0 : index
    %90 = vector.load %arg4[%c8, %c0_63, %c0_64] : memref<10x128x128xbf16, #tpu.memory_space<vmem>>, vector<1x128x128xbf16>
    %91 = vector.shape_cast %90 : vector<1x128x128xbf16> to vector<128x128xbf16>
    %cst_65 = arith.constant dense<0.000000e+00> : vector<32x128xf32>
    %92 = tpu.matmul %89, %91, %cst_65 {dimension_numbers = #tpu.dot_dimension_numbers<[1], [0], [0], [1], [0, 0, 1, 1], [], []>} : vector<32x128xbf16>, vector<128x128xbf16>, vector<32x128xf32> -> vector<32x128xf32>
    %c8_66 = arith.constant 8 : index
    %c0_67 = arith.constant 0 : index
    %c0_68 = arith.constant 0 : index
    %93 = vector.load %arg5[%c8_66, %c0_67, %c0_68] : memref<10x1x128xf32, #tpu.memory_space<vmem>>, vector<1x1x128xf32>
    %94 = vector.shape_cast %93 : vector<1x1x128xf32> to vector<1x128xf32>
    %95 = vector.broadcast %94 : vector<1x128xf32> to vector<32x128xf32>
    %96 = arith.addf %92, %95 : vector<32x128xf32>
    %cst_69 = arith.constant 0.000000e+00 : f32
    %97 = vector.broadcast %cst_69 : f32 to vector<32x128xf32>
    %98 = arith.maximumf %96, %97 : vector<32x128xf32>
    %99 = arith.truncf %98 : vector<32x128xf32> to vector<32x128xbf16>
    %c9 = arith.constant 9 : index
    %c0_70 = arith.constant 0 : index
    %c0_71 = arith.constant 0 : index
    %100 = vector.load %arg4[%c9, %c0_70, %c0_71] : memref<10x128x128xbf16, #tpu.memory_space<vmem>>, vector<1x128x128xbf16>
    %101 = vector.shape_cast %100 : vector<1x128x128xbf16> to vector<128x128xbf16>
    %cst_72 = arith.constant dense<0.000000e+00> : vector<32x128xf32>
    %102 = tpu.matmul %99, %101, %cst_72 {dimension_numbers = #tpu.dot_dimension_numbers<[1], [0], [0], [1], [0, 0, 1, 1], [], []>} : vector<32x128xbf16>, vector<128x128xbf16>, vector<32x128xf32> -> vector<32x128xf32>
    %c9_73 = arith.constant 9 : index
    %c0_74 = arith.constant 0 : index
    %c0_75 = arith.constant 0 : index
    %103 = vector.load %arg5[%c9_73, %c0_74, %c0_75] : memref<10x1x128xf32, #tpu.memory_space<vmem>>, vector<1x1x128xf32>
    %104 = vector.shape_cast %103 : vector<1x1x128xf32> to vector<1x128xf32>
    %105 = vector.broadcast %104 : vector<1x128xf32> to vector<32x128xf32>
    %106 = arith.addf %102, %105 : vector<32x128xf32>
    %cst_76 = arith.constant 0.000000e+00 : f32
    %107 = vector.broadcast %cst_76 : f32 to vector<32x128xf32>
    %108 = arith.maximumf %106, %107 : vector<32x128xf32>
    %109 = arith.truncf %108 : vector<32x128xf32> to vector<32x128xbf16>
    %c0_77 = arith.constant 0 : index
    %c0_78 = arith.constant 0 : index
    %110 = vector.load %arg6[%c0_77, %c0_78] : memref<128x128xbf16, #tpu.memory_space<vmem>>, vector<128x128xbf16>
    %cst_79 = arith.constant dense<0.000000e+00> : vector<32x128xf32>
    %111 = tpu.matmul %109, %110, %cst_79 {dimension_numbers = #tpu.dot_dimension_numbers<[1], [0], [0], [1], [0, 0, 1, 1], [], []>} : vector<32x128xbf16>, vector<128x128xbf16>, vector<32x128xf32> -> vector<32x128xf32>
    %c0_80 = arith.constant 0 : index
    %c0_81 = arith.constant 0 : index
    %112 = vector.load %arg7[%c0_80, %c0_81] : memref<1x128xf32, #tpu.memory_space<vmem>>, vector<1x128xf32>
    %113 = vector.broadcast %112 : vector<1x128xf32> to vector<32x128xf32>
    %114 = arith.addf %111, %113 : vector<32x128xf32>
    %c0_82 = arith.constant 0 : index
    %c0_83 = arith.constant 0 : index
    %115 = vector.load %arg8[%c0_82, %c0_83] : memref<32x128xf32, #tpu.memory_space<vmem>>, vector<32x128xf32>
    tpu.vector_store %arg8[%c0_82, %c0_83], %114 {strides = array<i32>} : memref<32x128xf32, #tpu.memory_space<vmem>>, vector<32x128xf32>,
    return
  }
  func.func @transform_0(%arg0: i32) -> (i32, i32) {
    %c0_i32 = arith.constant 0 : i32
    %c0_i32_0 = arith.constant 0 : i32
    return %arg0, %c0_i32 : i32, i32
  }
  func.func @transform_1(%arg0: i32) -> (i32, i32) {
    %c0_i32 = arith.constant 0 : i32
    %c0_i32_0 = arith.constant 0 : i32
    %c0_i32_1 = arith.constant 0 : i32
    return %c0_i32, %c0_i32_0 : i32, i32
  }
  func.func @transform_2(%arg0: i32) -> (i32, i32) {
    %c0_i32 = arith.constant 0 : i32
    %c0_i32_0 = arith.constant 0 : i32
    %c0_i32_1 = arith.constant 0 : i32
    return %c0_i32, %c0_i32_0 : i32, i32
  }
  func.func @transform_3(%arg0: i32) -> (i32, i32, i32) {
    %c0_i32 = arith.constant 0 : i32
    %c0_i32_0 = arith.constant 0 : i32
    %c0_i32_1 = arith.constant 0 : i32
    %c0_i32_2 = arith.constant 0 : i32
    return %c0_i32, %c0_i32_0, %c0_i32_1 : i32, i32, i32
  }
  func.func @transform_4(%arg0: i32) -> (i32, i32, i32) {
    %c0_i32 = arith.constant 0 : i32
    %c0_i32_0 = arith.constant 0 : i32
    %c0_i32_1 = arith.constant 0 : i32
    %c0_i32_2 = arith.constant 0 : i32
    return %c0_i32, %c0_i32_0, %c0_i32_1 : i32, i32, i32
  }
  func.func @transform_5(%arg0: i32) -> (i32, i32) {
    %c0_i32 = arith.constant 0 : i32
    %c0_i32_0 = arith.constant 0 : i32
    %c0_i32_1 = arith.constant 0 : i32
    return %c0_i32, %c0_i32_0 : i32, i32
  }
  func.func @transform_6(%arg0: i32) -> (i32, i32) {
    %c0_i32 = arith.constant 0 : i32
    %c0_i32_0 = arith.constant 0 : i32
    %c0_i32_1 = arith.constant 0 : i32
    return %c0_i32, %c0_i32_0 : i32, i32
  }
  func.func @transform_7(%arg0: i32) -> (i32, i32) {
    %c0_i32 = arith.constant 0 : i32
    %c0_i32_0 = arith.constant 0 : i32
    return %arg0, %c0_i32 : i32, i32
  }
}

</mosaic_0001>

<llo_original>
// kernel: pinn_forward.1
$region0: #{pinn_forward.1}
  #allocation0 [shape = 'u32[]', space=smem, size = 0x4, offset = 0x4, fixed_abs, tag = 'smem constant byte address 0x4 - core index']
  #allocation1 [shape = 'u32[72,128]{1,0:T(1,128)}', space=vmem, size = 0x9000, scoped, tag = 'internal scratch']
  %s0 = inlined_call_operand.vmem [shape: f32[32,8], index: 0, kind: input, shape index: {}]
  %s1 = inlined_call_operand.vmem [shape: bf16[8,128], index: 1, kind: input, shape index: {}]
  %s2 = inlined_call_operand.vmem [shape: f32[1,128], index: 2, kind: input, shape index: {}]
  %s3 = inlined_call_operand.hbm [shape: bf16[10,128,128], index: 3, kind: input, shape index: {}]
  %s4 = inlined_call_operand.vmem [shape: f32[10,1,128], index: 4, kind: input, shape index: {}]
  %s5 = inlined_call_operand.vmem [shape: bf16[128,128], index: 5, kind: input, shape index: {}]
  %s6 = inlined_call_operand.vmem [shape: f32[1,128], index: 6, kind: input, shape index: {}]
  %s7 = inlined_call_operand.vmem [shape: f32[32,128], index: 7, kind: output, shape index: {}]
  %s8 = sld [smem:[#allocation0]]
  $region42: #{pinn_forward.1} parent=0
    _
  %s10 = ssub.s32 1, %s8
  %s11 = scalar_select 0, %s10, %s8
  $region1: #{pinn_forward.1} parent=0
    #allocation2 [shape = 'u8[327680]{0}', space=vmem, size = 0x50000, scoped, tag = 'input window, operand 3, single buffered']
    #allocation3 [shape = 's32[1]{0}', space=sflag, size = 0x4, scoped, tag = 'scoped memory for pinn_forward.1']
    %12 = vsyncpa [#allocation3], 0
    // Predicated region
    $region2: #{pinn_forward.1} parent=1 // pred_check
      _
    $region3: #{pinn_forward.1} parent=1 // pred_check_branch
      %14 = sbr.rel (0) target = $region5
    $region4: #{pinn_forward.1} parent=1 // pred_region
      _
    $region5: #{pinn_forward.1} parent=1 // pred_fallthru
      _
    // Predicated region
    $region6: #{pinn_forward.1} parent=1 // pred_check
      _
    $region7: #{pinn_forward.1} parent=1 // pred_check_branch
      %16 = sbr.rel (0) target = $region9
    $region8: #{pinn_forward.1} parent=1 // pred_region
      _
    $region9: #{pinn_forward.1} parent=1 // pred_fallthru
      _
    // Predicated region
    $region10: #{pinn_forward.1} parent=1 // pred_check
      _
    $region11: #{pinn_forward.1} parent=1 // pred_check_branch
      %18 = sbr.rel (0) target = $region13
    $region12: #{pinn_forward.1} parent=1 // pred_region
      _
    $region13: #{pinn_forward.1} parent=1 // pred_fallthru
      _
    // Predicated region
    $region14: #{pinn_forward.1} parent=1 // pred_check
      _
    $region15: #{pinn_forward.1} parent=1 // pred_check_branch
      %20 = sbr.rel (0) target = $region17
    $region16: #{pinn_forward.1} parent=1 // pred_region
      %22 = vsyncadd [#allocation3], 0
      %s23 = sshll.u32 %s3, 4
      %s24 = int_to_ptr.hbm [resolvable:$true] %s23
      %s25 = sshll.u32 [#allocation2], 4
      %s26 = int_to_ptr.vmem [resolvable:$true] %s25
      %31 = dma.hbm_to_vmem [thread:$0]  %s24, 10240, %s26, [#allocation3], 64, 64, 4
    $region17: #{pinn_forward.1} parent=1 // pred_fallthru
      _
    // Predicated region
    $region18: #{pinn_forward.1} parent=1 // pred_check
      _
    $region19: #{pinn_forward.1} parent=1 // pred_check_branch
      %33 = sbr.rel (0) target = $region21
    $region20: #{pinn_forward.1} parent=1 // pred_region
      _
    $region21: #{pinn_forward.1} parent=1 // pred_fallthru
      _
    // Predicated region
    $region22: #{pinn_forward.1} parent=1 // pred_check
      _
    $region23: #{pinn_forward.1} parent=1 // pred_check_branch
      %35 = sbr.rel (0) target = $region25
    $region24: #{pinn_forward.1} parent=1 // pred_region
      _
    $region25: #{pinn_forward.1} parent=1 // pred_fallthru
      _
    // Predicated region
    $region26: #{pinn_forward.1} parent=1 // pred_check
      _
    $region27: #{pinn_forward.1} parent=1 // pred_check_branch
      %37 = sbr.rel (0) target = $region29
    $region28: #{pinn_forward.1} parent=1 // pred_region
      _
    $region29: #{pinn_forward.1} parent=1 // pred_fallthru
      _
    // Predicated region
    $region30: #{pinn_forward.1} parent=1 // pred_check
      _
    $region31: #{pinn_forward.1} parent=1 // pred_check_branch
      %39 = sbr.rel (0) target = $region33
    $region32: #{pinn_forward.1} parent=1 // pred_region
      %41 = dma.done [#allocation3], 10240
    $region33: #{pinn_forward.1} parent=1 // pred_fallthru
      _
    %v43 = vld [vmem:[%s0] sm:$0xff]
    %v44 = vld [vmem:[%s0 + $0x8] sm:$0xff]
    %v45 = vld [vmem:[%s0 + $0x10] sm:$0xff]
    %v46 = vld [vmem:[%s0 + $0x18] sm:$0xff]
    %v47 = vpack.c.bf16 %v44, %v43
    %v48 = vpack.c.bf16 %v46, %v45
    %v49 = vld [vmem:[%s1] sm:$0xf]
    %v50 = vld [vmem:[%s2] sm:$0x1]
    %v52 = vperm.slane %v50, 0
    %vm54 = vcmask 64512
    %v56 = vsel %vm54, %v47, 0
    %v59 = vsel %vm54, %v48, 0
    %vm61 = vcmask 1043456
    %v63 = vsel %vm61, %v49, 0
    %65 = vmatpush.bf16.msra.mxu0 0
    %66 = vmatpush.bf16.msra.mxu0 0
    %67 = vmatpush.bf16.msra.mxu0 0
    %68 = vmatpush.bf16.msra.mxu0 0
    %69 = vmatpush.bf16.msra.mxu0 0
    %70 = vmatpush.bf16.msra.mxu0 0
    %71 = vmatpush.bf16.msra.mxu0 0
    %72 = vmatpush.bf16.msra.mxu0 %v63
    %73 = vmatmul.bf16.gmra.mxu0 %v56
    %v74 = vpop.f32.mrf.mxu0
    %v75 = vadd.f32 %v52, %v74
    %v76 = vpop.f32.mrf.mxu0
    %v77 = vadd.f32 %v52, %v76
    %78 = vmatmul.bf16.gmra.mxu0 %v59
    %v79 = vpop.f32.mrf.mxu0
    %v80 = vadd.f32 %v52, %v79
    %v81 = vpop.f32.mrf.mxu0
    %v82 = vadd.f32 %v52, %v81
    %83 = vdwg.mxu0
    %v84 = vmax.f32 %v75, 0.0
    %v85 = vmax.f32 %v77, 0.0
    %v86 = vmax.f32 %v80, 0.0
    %v87 = vmax.f32 %v82, 0.0
    %v88 = vpack.c.bf16 %v85, %v84
    %v89 = vpack.c.bf16 %v87, %v86
    %v90 = vld [vmem:[#allocation2] sm:$0xf]
    %v91 = vld [vmem:[#allocation2 + $0x4] sm:$0xf]
    %v92 = vld [vmem:[#allocation2 + $0x8] sm:$0xf]
    %v93 = vld [vmem:[#allocation2 + $0xc] sm:$0xf]
    %v94 = vld [vmem:[#allocation2 + $0x10] sm:$0xf]
    %v95 = vld [vmem:[#allocation2 + $0x14] sm:$0xf]
    %v96 = vld [vmem:[#allocation2 + $0x18] sm:$0xf]
    %v97 = vld [vmem:[#allocation2 + $0x1c] sm:$0xf]
    %v98 = vld [vmem:[#allocation2 + $0x20] sm:$0xf]
    %v99 = vld [vmem:[#allocation2 + $0x24] sm:$0xf]
    %v100 = vld [vmem:[#allocation2 + $0x28] sm:$0xf]
    %v101 = vld [vmem:[#allocation2 + $0x2c] sm:$0xf]
    %v102 = vld [vmem:[#allocation2 + $0x30] sm:$0xf]
    %v103 = vld [vmem:[#allocation2 + $0x34] sm:$0xf]
    %v104 = vld [vmem:[#allocation2 + $0x38] sm:$0xf]
    %v105 = vld [vmem:[#allocation2 + $0x3c] sm:$0xf]
    %v106 = vld [vmem:[%s4] sm:$0x1]
    %v108 = vperm.slane %v106, 0
    %v126 = vunpack.c.l.b16 %v90
    %v127 = vunpack.c.l.b16 %v91
    %v128 = vunpack.c.l.b16 %v92
    %v129 = vunpack.c.l.b16 %v93
    %v130 = vunpack.c.l.b16 %v94
    %v131 = vunpack.c.l.b16 %v95
    %v132 = vunpack.c.l.b16 %v96
    %v133 = vunpack.c.l.b16 %v97
    %v134 = vunpack.c.l.b16 %v98
    %v135 = vunpack.c.l.b16 %v99
    %v136 = vunpack.c.l.b16 %v100
    %v137 = vunpack.c.l.b16 %v101
    %v138 = vunpack.c.l.b16 %v102
    %v139 = vunpack.c.l.b16 %v103
    %v140 = vunpack.c.l.b16 %v104
    %v141 = vunpack.c.l.b16 %v105
    %v142 = vpack.c.b16 %v127, %v126
    %v143 = vpack.c.b16 %v129, %v128
    %v144 = vpack.c.b16 %v131, %v130
    %v145 = vpack.c.b16 %v133, %v132
    %v146 = vpack.c.b16 %v135, %v134
    %v147 = vpack.c.b16 %v137, %v136
    %v148 = vpack.c.b16 %v139, %v138
    %v149 = vpack.c.b16 %v141, %v140
    %158 = vmatpush.bf16.msra.mxu0 %v149
    %159 = vmatpush.bf16.msra.mxu0 %v148
    %160 = vmatpush.bf16.msra.mxu0 %v147
    %161 = vmatpush.bf16.msra.mxu0 %v146
    %162 = vmatpush.bf16.msra.mxu0 %v145
    %163 = vmatpush.bf16.msra.mxu0 %v144
    %164 = vmatpush.bf16.msra.mxu0 %v143
    %165 = vmatpush.bf16.msra.mxu0 %v142
    %166 = vmatmul.bf16.gmra.mxu0 %v88
    %v167 = vpop.f32.mrf.mxu0
    %v168 = vadd.f32 %v108, %v167
    %v169 = vpop.f32.mrf.mxu0
    %v170 = vadd.f32 %v108, %v169
    %171 = vmatmul.bf16.gmra.mxu0 %v89
    %v172 = vpop.f32.mrf.mxu0
    %v173 = vadd.f32 %v108, %v172
    %v174 = vpop.f32.mrf.mxu0
    %v175 = vadd.f32 %v108, %v174
    %176 = vdwg.mxu0
    %v177 = vmax.f32 %v168, 0.0
    %v178 = vmax.f32 %v170, 0.0
    %v179 = vmax.f32 %v173, 0.0
    %v180 = vmax.f32 %v175, 0.0
    %v181 = vpack.c.bf16 %v178, %v177
    %v182 = vpack.c.bf16 %v180, %v179
    %s183 = scalar_lea.vmem [#allocation2], 64
    %v184 = vld [vmem:[%s183] sm:$0xf]
    %v185 = vld [vmem:[%s183 + $0x4] sm:$0xf]
    %v186 = vld [vmem:[%s183 + $0x8] sm:$0xf]
    %v187 = vld [vmem:[%s183 + $0xc] sm:$0xf]
    %v188 = vld [vmem:[%s183 + $0x10] sm:$0xf]
    %v189 = vld [vmem:[%s183 + $0x14] sm:$0xf]
    %v190 = vld [vmem:[%s183 + $0x18] sm:$0xf]
    %v191 = vld [vmem:[%s183 + $0x1c] sm:$0xf]
    %v192 = vld [vmem:[%s183 + $0x20] sm:$0xf]
    %v193 = vld [vmem:[%s183 + $0x24] sm:$0xf]
    %v194 = vld [vmem:[%s183 + $0x28] sm:$0xf]
    %v195 = vld [vmem:[%s183 + $0x2c] sm:$0xf]
    %v196 = vld [vmem:[%s183 + $0x30] sm:$0xf]
    %v197 = vld [vmem:[%s183 + $0x34] sm:$0xf]
    %v198 = vld [vmem:[%s183 + $0x38] sm:$0xf]
    %v199 = vld [vmem:[%s183 + $0x3c] sm:$0xf]
    %s200 = scalar_lea.vmem %s4, 1
    %v201 = vld [vmem:[%s200] sm:$0x1]
    %v203 = vperm.slane %v201, 0
    %v221 = vunpack.c.l.b16 %v184
    %v222 = vunpack.c.l.b16 %v185
    %v223 = vunpack.c.l.b16 %v186
    %v224 = vunpack.c.l.b16 %v187
    %v225 = vunpack.c.l.b16 %v188
    %v226 = vunpack.c.l.b16 %v189
    %v227 = vunpack.c.l.b16 %v190
    %v228 = vunpack.c.l.b16 %v191
    %v229 = vunpack.c.l.b16 %v192
    %v230 = vunpack.c.l.b16 %v193
    %v231 = vunpack.c.l.b16 %v194
    %v232 = vunpack.c.l.b16 %v195
    %v233 = vunpack.c.l.b16 %v196
    %v234 = vunpack.c.l.b16 %v197
    %v235 = vunpack.c.l.b16 %v198
    %v236 = vunpack.c.l.b16 %v199
    %v237 = vpack.c.b16 %v222, %v221
    %v238 = vpack.c.b16 %v224, %v223
    %v239 = vpack.c.b16 %v226, %v225
    %v240 = vpack.c.b16 %v228, %v227
    %v241 = vpack.c.b16 %v230, %v229
    %v242 = vpack.c.b16 %v232, %v231
    %v243 = vpack.c.b16 %v234, %v233
    %v244 = vpack.c.b16 %v236, %v235
    %253 = vmatpush.bf16.msra.mxu0 %v244
    %254 = vmatpush.bf16.msra.mxu0 %v243
    %255 = vmatpush.bf16.msra.mxu0 %v242
    %256 = vmatpush.bf16.msra.mxu0 %v241
    %257 = vmatpush.bf16.msra.mxu0 %v240
    %258 = vmatpush.bf16.msra.mxu0 %v239
    %259 = vmatpush.bf16.msra.mxu0 %v238
    %260 = vmatpush.bf16.msra.mxu0 %v237
    %261 = vmatmul.bf16.gmra.mxu0 %v181
    %v262 = vpop.f32.mrf.mxu0
    %v263 = vadd.f32 %v203, %v262
    %v264 = vpop.f32.mrf.mxu0
    %v265 = vadd.f32 %v203, %v264
    %266 = vmatmul.bf16.gmra.mxu0 %v182
    %v267 = vpop.f32.mrf.mxu0
    %v268 = vadd.f32 %v203, %v267
    %v269 = vpop.f32.mrf.mxu0
    %v270 = vadd.f32 %v203, %v269
    %271 = vdwg.mxu0
    %v272 = vmax.f32 %v263, 0.0
    %v273 = vmax.f32 %v265, 0.0
    %v274 = vmax.f32 %v268, 0.0
    %v275 = vmax.f32 %v270, 0.0
    %v276 = vpack.c.bf16 %v273, %v272
    %v277 = vpack.c.bf16 %v275, %v274
    %s278 = scalar_lea.vmem [#allocation2], 128
    %v279 = vld [vmem:[%s278] sm:$0xf]
    %v280 = vld [vmem:[%s278 + $0x4] sm:$0xf]
    %v281 = vld [vmem:[%s278 + $0x8] sm:$0xf]
    %v282 = vld [vmem:[%s278 + $0xc] sm:$0xf]
    %v283 = vld [vmem:[%s278 + $0x10] sm:$0xf]
    %v284 = vld [vmem:[%s278 + $0x14] sm:$0xf]
    %v285 = vld [vmem:[%s278 + $0x18] sm:$0xf]
    %v286 = vld [vmem:[%s278 + $0x1c] sm:$0xf]
    %v287 = vld [vmem:[%s278 + $0x20] sm:$0xf]
    %v288 = vld [vmem:[%s278 + $0x24] sm:$0xf]
    %v289 = vld [vmem:[%s278 + $0x28] sm:$0xf]
    %v290 = vld [vmem:[%s278 + $0x2c] sm:$0xf]
    %v291 = vld [vmem:[%s278 + $0x30] sm:$0xf]
    %v292 = vld [vmem:[%s278 + $0x34] sm:$0xf]
    %v293 = vld [vmem:[%s278 + $0x38] sm:$0xf]
    %v294 = vld [vmem:[%s278 + $0x3c] sm:$0xf]
    %s295 = scalar_lea.vmem %s4, 2
    %v296 = vld [vmem:[%s295] sm:$0x1]
    %v298 = vperm.slane %v296, 0
    %v316 = vunpack.c.l.b16 %v279
    %v317 = vunpack.c.l.b16 %v280
    %v318 = vunpack.c.l.b16 %v281
    %v319 = vunpack.c.l.b16 %v282
    %v320 = vunpack.c.l.b16 %v283
    %v321 = vunpack.c.l.b16 %v284
    %v322 = vunpack.c.l.b16 %v285
    %v323 = vunpack.c.l.b16 %v286
    %v324 = vunpack.c.l.b16 %v287
    %v325 = vunpack.c.l.b16 %v288
    %v326 = vunpack.c.l.b16 %v289
    %v327 = vunpack.c.l.b16 %v290
    %v328 = vunpack.c.l.b16 %v291
    %v329 = vunpack.c.l.b16 %v292
    %v330 = vunpack.c.l.b16 %v293
    %v331 = vunpack.c.l.b16 %v294
    %v332 = vpack.c.b16 %v317, %v316
    %v333 = vpack.c.b16 %v319, %v318
    %v334 = vpack.c.b16 %v321, %v320
    %v335 = vpack.c.b16 %v323, %v322
    %v336 = vpack.c.b16 %v325, %v324
    %v337 = vpack.c.b16 %v327, %v326
    %v338 = vpack.c.b16 %v329, %v328
    %v339 = vpack.c.b16 %v331, %v330
    %348 = vmatpush.bf16.msra.mxu0 %v339
    %349 = vmatpush.bf16.msra.mxu0 %v338
    %350 = vmatpush.bf16.msra.mxu0 %v337
    %351 = vmatpush.bf16.msra.mxu0 %v336
    %352 = vmatpush.bf16.msra.mxu0 %v335
    %353 = vmatpush.bf16.msra.mxu0 %v334
    %354 = vmatpush.bf16.msra.mxu0 %v333
    %355 = vmatpush.bf16.msra.mxu0 %v332
    %356 = vmatmul.bf16.gmra.mxu0 %v276
    %v357 = vpop.f32.mrf.mxu0
    %v358 = vadd.f32 %v298, %v357
    %v359 = vpop.f32.mrf.mxu0
    %v360 = vadd.f32 %v298, %v359
    %361 = vmatmul.bf16.gmra.mxu0 %v277
    %v362 = vpop.f32.mrf.mxu0
    %v363 = vadd.f32 %v298, %v362
    %v364 = vpop.f32.mrf.mxu0
    %v365 = vadd.f32 %v298, %v364
    %366 = vdwg.mxu0
    %v367 = vmax.f32 %v358, 0.0
    %v368 = vmax.f32 %v360, 0.0
    %v369 = vmax.f32 %v363, 0.0
    %v370 = vmax.f32 %v365, 0.0
    %v371 = vpack.c.bf16 %v368, %v367
    %v372 = vpack.c.bf16 %v370, %v369
    %s373 = scalar_lea.vmem [#allocation2], 192
    %v374 = vld [vmem:[%s373] sm:$0xf]
    %v375 = vld [vmem:[%s373 + $0x4] sm:$0xf]
    %v376 = vld [vmem:[%s373 + $0x8] sm:$0xf]
    %v377 = vld [vmem:[%s373 + $0xc] sm:$0xf]
    %v378 = vld [vmem:[%s373 + $0x10] sm:$0xf]
    %v379 = vld [vmem:[%s373 + $0x14] sm:$0xf]
    %v380 = vld [vmem:[%s373 + $0x18] sm:$0xf]
    %v381 = vld [vmem:[%s373 + $0x1c] sm:$0xf]
    %v382 = vld [vmem:[%s373 + $0x20] sm:$0xf]
    %v383 = vld [vmem:[%s373 + $0x24] sm:$0xf]
    %v384 = vld [vmem:[%s373 + $0x28] sm:$0xf]
    %v385 = vld [vmem:[%s373 + $0x2c] sm:$0xf]
    %v386 = vld [vmem:[%s373 + $0x30] sm:$0xf]
    %v387 = vld [vmem:[%s373 + $0x34] sm:$0xf]
    %v388 = vld [vmem:[%s373 + $0x38] sm:$0xf]
    %v389 = vld [vmem:[%s373 + $0x3c] sm:$0xf]
    %s390 = scalar_lea.vmem %s4, 3
    %v391 = vld [vmem:[%s390] sm:$0x1]
    %v393 = vperm.slane %v391, 0
    %v411 = vunpack.c.l.b16 %v374
    %v412 = vunpack.c.l.b16 %v375
    %v413 = vunpack.c.l.b16 %v376
    %v414 = vunpack.c.l.b16 %v377
    %v415 = vunpack.c.l.b16 %v378
    %v416 = vunpack.c.l.b16 %v379
    %v417 = vunpack.c.l.b16 %v380
    %v418 = vunpack.c.l.b16 %v381
    %v419 = vunpack.c.l.b16 %v382
    %v420 = vunpack.c.l.b16 %v383
    %v421 = vunpack.c.l.b16 %v384
    %v422 = vunpack.c.l.b16 %v385
    %v423 = vunpack.c.l.b16 %v386
    %v424 = vunpack.c.l.b16 %v387
    %v425 = vunpack.c.l.b16 %v388
    %v426 = vunpack.c.l.b16 %v389
    %v427 = vpack.c.b16 %v412, %v411
    %v428 = vpack.c.b16 %v414, %v413
    %v429 = vpack.c.b16 %v416, %v415
    %v430 = vpack.c.b16 %v418, %v417
    %v431 = vpack.c.b16 %v420, %v419
    %v432 = vpack.c.b16 %v422, %v421
    %v433 = vpack.c.b16 %v424, %v423
    %v434 = vpack.c.b16 %v426, %v425
    %443 = vmatpush.bf16.msra.mxu0 %v434
    %444 = vmatpush.bf16.msra.mxu0 %v433
    %445 = vmatpush.bf16.msra.mxu0 %v432
    %446 = vmatpush.bf16.msra.mxu0 %v431
    %447 = vmatpush.bf16.msra.mxu0 %v430
    %448 = vmatpush.bf16.msra.mxu0 %v429
    %449 = vmatpush.bf16.msra.mxu0 %v428
    %450 = vmatpush.bf16.msra.mxu0 %v427
    %451 = vmatmul.bf16.gmra.mxu0 %v371
    %v452 = vpop.f32.mrf.mxu0
    %v453 = vadd.f32 %v393, %v452
    %v454 = vpop.f32.mrf.mxu0
    %v455 = vadd.f32 %v393, %v454
    %456 = vmatmul.bf16.gmra.mxu0 %v372
    %v457 = vpop.f32.mrf.mxu0
    %v458 = vadd.f32 %v393, %v457
    %v459 = vpop.f32.mrf.mxu0
    %v460 = vadd.f32 %v393, %v459
    %461 = vdwg.mxu0
    %v462 = vmax.f32 %v453, 0.0
    %v463 = vmax.f32 %v455, 0.0
    %v464 = vmax.f32 %v458, 0.0
    %v465 = vmax.f32 %v460, 0.0
    %v466 = vpack.c.bf16 %v463, %v462
    %v467 = vpack.c.bf16 %v465, %v464
    %s468 = scalar_lea.vmem [#allocation2], 256
    %v469 = vld [vmem:[%s468] sm:$0xf]
    %v470 = vld [vmem:[%s468 + $0x4] sm:$0xf]
    %v471 = vld [vmem:[%s468 + $0x8] sm:$0xf]
    %v472 = vld [vmem:[%s468 + $0xc] sm:$0xf]
    %v473 = vld [vmem:[%s468 + $0x10] sm:$0xf]
    %v474 = vld [vmem:[%s468 + $0x14] sm:$0xf]
    %v475 = vld [vmem:[%s468 + $0x18] sm:$0xf]
    %v476 = vld [vmem:[%s468 + $0x1c] sm:$0xf]
    %v477 = vld [vmem:[%s468 + $0x20] sm:$0xf]
    %v478 = vld [vmem:[%s468 + $0x24] sm:$0xf]
    %v479 = vld [vmem:[%s468 + $0x28] sm:$0xf]
    %v480 = vld [vmem:[%s468 + $0x2c] sm:$0xf]
    %v481 = vld [vmem:[%s468 + $0x30] sm:$0xf]
    %v482 = vld [vmem:[%s468 + $0x34] sm:$0xf]
    %v483 = vld [vmem:[%s468 + $0x38] sm:$0xf]
    %v484 = vld [vmem:[%s468 + $0x3c] sm:$0xf]
    %s485 = scalar_lea.vmem %s4, 4
    %v486 = vld [vmem:[%s485] sm:$0x1]
    %v488 = vperm.slane %v486, 0
    %v506 = vunpack.c.l.b16 %v469
    %v507 = vunpack.c.l.b16 %v470
    %v508 = vunpack.c.l.b16 %v471
    %v509 = vunpack.c.l.b16 %v472
    %v510 = vunpack.c.l.b16 %v473
    %v511 = vunpack.c.l.b16 %v474
    %v512 = vunpack.c.l.b16 %v475
    %v513 = vunpack.c.l.b16 %v476
    %v514 = vunpack.c.l.b16 %v477
    %v515 = vunpack.c.l.b16 %v478
    %v516 = vunpack.c.l.b16 %v479
    %v517 = vunpack.c.l.b16 %v480
    %v518 = vunpack.c.l.b16 %v481
    %v519 = vunpack.c.l.b16 %v482
    %v520 = vunpack.c.l.b16 %v483
    %v521 = vunpack.c.l.b16 %v484
    %v522 = vpack.c.b16 %v507, %v506
    %v523 = vpack.c.b16 %v509, %v508
    %v524 = vpack.c.b16 %v511, %v510
    %v525 = vpack.c.b16 %v513, %v512
    %v526 = vpack.c.b16 %v515, %v514
    %v527 = vpack.c.b16 %v517, %v516
    %v528 = vpack.c.b16 %v519, %v518
    %v529 = vpack.c.b16 %v521, %v520
    %538 = vmatpush.bf16.msra.mxu0 %v529
    %539 = vmatpush.bf16.msra.mxu0 %v528
    %540 = vmatpush.bf16.msra.mxu0 %v527
    %541 = vmatpush.bf16.msra.mxu0 %v526
    %542 = vmatpush.bf16.msra.mxu0 %v525
    %543 = vmatpush.bf16.msra.mxu0 %v524
    %544 = vmatpush.bf16.msra.mxu0 %v523
    %545 = vmatpush.bf16.msra.mxu0 %v522
    %546 = vmatmul.bf16.gmra.mxu0 %v466
    %v547 = vpop.f32.mrf.mxu0
    %v548 = vadd.f32 %v488, %v547
    %v549 = vpop.f32.mrf.mxu0
    %v550 = vadd.f32 %v488, %v549
    %551 = vmatmul.bf16.gmra.mxu0 %v467
    %v552 = vpop.f32.mrf.mxu0
    %v553 = vadd.f32 %v488, %v552
    %v554 = vpop.f32.mrf.mxu0
    %v555 = vadd.f32 %v488, %v554
    %556 = vdwg.mxu0
    %v557 = vmax.f32 %v548, 0.0
    %v558 = vmax.f32 %v550, 0.0
    %v559 = vmax.f32 %v553, 0.0
    %v560 = vmax.f32 %v555, 0.0
    %v561 = vpack.c.bf16 %v558, %v557
    %v562 = vpack.c.bf16 %v560, %v559
    %s563 = scalar_lea.vmem [#allocation2], 320
    %v564 = vld [vmem:[%s563] sm:$0xf]
    %v565 = vld [vmem:[%s563 + $0x4] sm:$0xf]
    %v566 = vld [vmem:[%s563 + $0x8] sm:$0xf]
    %v567 = vld [vmem:[%s563 + $0xc] sm:$0xf]
    %v568 = vld [vmem:[%s563 + $0x10] sm:$0xf]
    %v569 = vld [vmem:[%s563 + $0x14] sm:$0xf]
    %v570 = vld [vmem:[%s563 + $0x18] sm:$0xf]
    %v571 = vld [vmem:[%s563 + $0x1c] sm:$0xf]
    %v572 = vld [vmem:[%s563 + $0x20] sm:$0xf]
    %v573 = vld [vmem:[%s563 + $0x24] sm:$0xf]
    %v574 = vld [vmem:[%s563 + $0x28] sm:$0xf]
    %v575 = vld [vmem:[%s563 + $0x2c] sm:$0xf]
    %v576 = vld [vmem:[%s563 + $0x30] sm:$0xf]
    %v577 = vld [vmem:[%s563 + $0x34] sm:$0xf]
    %v578 = vld [vmem:[%s563 + $0x38] sm:$0xf]
    %v579 = vld [vmem:[%s563 + $0x3c] sm:$0xf]
    %s580 = scalar_lea.vmem %s4, 5
    %v581 = vld [vmem:[%s580] sm:$0x1]
    %v583 = vperm.slane %v581, 0
    %v601 = vunpack.c.l.b16 %v564
    %v602 = vunpack.c.l.b16 %v565
    %v603 = vunpack.c.l.b16 %v566
    %v604 = vunpack.c.l.b16 %v567
    %v605 = vunpack.c.l.b16 %v568
    %v606 = vunpack.c.l.b16 %v569
    %v607 = vunpack.c.l.b16 %v570
    %v608 = vunpack.c.l.b16 %v571
    %v609 = vunpack.c.l.b16 %v572
    %v610 = vunpack.c.l.b16 %v573
    %v611 = vunpack.c.l.b16 %v574
    %v612 = vunpack.c.l.b16 %v575
    %v613 = vunpack.c.l.b16 %v576
    %v614 = vunpack.c.l.b16 %v577
    %v615 = vunpack.c.l.b16 %v578
    %v616 = vunpack.c.l.b16 %v579
    %v617 = vpack.c.b16 %v602, %v601
    %v618 = vpack.c.b16 %v604, %v603
    %v619 = vpack.c.b16 %v606, %v605
    %v620 = vpack.c.b16 %v608, %v607
    %v621 = vpack.c.b16 %v610, %v609
    %v622 = vpack.c.b16 %v612, %v611
    %v623 = vpack.c.b16 %v614, %v613
    %v624 = vpack.c.b16 %v616, %v615
    %633 = vmatpush.bf16.msra.mxu0 %v624
    %634 = vmatpush.bf16.msra.mxu0 %v623
    %635 = vmatpush.bf16.msra.mxu0 %v622
    %636 = vmatpush.bf16.msra.mxu0 %v621
    %637 = vmatpush.bf16.msra.mxu0 %v620
    %638 = vmatpush.bf16.msra.mxu0 %v619
    %639 = vmatpush.bf16.msra.mxu0 %v618
    %640 = vmatpush.bf16.msra.mxu0 %v617
    %641 = vmatmul.bf16.gmra.mxu0 %v561
    %v642 = vpop.f32.mrf.mxu0
    %v643 = vadd.f32 %v583, %v642
    %v644 = vpop.f32.mrf.mxu0
    %v645 = vadd.f32 %v583, %v644
    %646 = vmatmul.bf16.gmra.mxu0 %v562
    %v647 = vpop.f32.mrf.mxu0
    %v648 = vadd.f32 %v583, %v647
    %v649 = vpop.f32.mrf.mxu0
    %v650 = vadd.f32 %v583, %v649
    %651 = vdwg.mxu0
    %v652 = vmax.f32 %v643, 0.0
    %v653 = vmax.f32 %v645, 0.0
    %v654 = vmax.f32 %v648, 0.0
    %v655 = vmax.f32 %v650, 0.0
    %v656 = vpack.c.bf16 %v653, %v652
    %v657 = vpack.c.bf16 %v655, %v654
    %s658 = scalar_lea.vmem [#allocation2], 384
    %v659 = vld [vmem:[%s658] sm:$0xf]
    %v660 = vld [vmem:[%s658 + $0x4] sm:$0xf]
    %v661 = vld [vmem:[%s658 + $0x8] sm:$0xf]
    %v662 = vld [vmem:[%s658 + $0xc] sm:$0xf]
    %v663 = vld [vmem:[%s658 + $0x10] sm:$0xf]
    %v664 = vld [vmem:[%s658 + $0x14] sm:$0xf]
    %v665 = vld [vmem:[%s658 + $0x18] sm:$0xf]
    %v666 = vld [vmem:[%s658 + $0x1c] sm:$0xf]
    %v667 = vld [vmem:[%s658 + $0x20] sm:$0xf]
    %v668 = vld [vmem:[%s658 + $0x24] sm:$0xf]
    %v669 = vld [vmem:[%s658 + $0x28] sm:$0xf]
    %v670 = vld [vmem:[%s658 + $0x2c] sm:$0xf]
    %v671 = vld [vmem:[%s658 + $0x30] sm:$0xf]
    %v672 = vld [vmem:[%s658 + $0x34] sm:$0xf]
    %v673 = vld [vmem:[%s658 + $0x38] sm:$0xf]
    %v674 = vld [vmem:[%s658 + $0x3c] sm:$0xf]
    %s675 = scalar_lea.vmem %s4, 6
    %v676 = vld [vmem:[%s675] sm:$0x1]
    %v678 = vperm.slane %v676, 0
    %v696 = vunpack.c.l.b16 %v659
    %v697 = vunpack.c.l.b16 %v660
    %v698 = vunpack.c.l.b16 %v661
    %v699 = vunpack.c.l.b16 %v662
    %v700 = vunpack.c.l.b16 %v663
    %v701 = vunpack.c.l.b16 %v664
    %v702 = vunpack.c.l.b16 %v665
    %v703 = vunpack.c.l.b16 %v666
    %v704 = vunpack.c.l.b16 %v667
    %v705 = vunpack.c.l.b16 %v668
    %v706 = vunpack.c.l.b16 %v669
    %v707 = vunpack.c.l.b16 %v670
    %v708 = vunpack.c.l.b16 %v671
    %v709 = vunpack.c.l.b16 %v672
    %v710 = vunpack.c.l.b16 %v673
    %v711 = vunpack.c.l.b16 %v674
    %v712 = vpack.c.b16 %v697, %v696
    %v713 = vpack.c.b16 %v699, %v698
    %v714 = vpack.c.b16 %v701, %v700
    %v715 = vpack.c.b16 %v703, %v702
    %v716 = vpack.c.b16 %v705, %v704
    %v717 = vpack.c.b16 %v707, %v706
    %v718 = vpack.c.b16 %v709, %v708
    %v719 = vpack.c.b16 %v711, %v710
    %728 = vmatpush.bf16.msra.mxu0 %v719
    %729 = vmatpush.bf16.msra.mxu0 %v718
    %730 = vmatpush.bf16.msra.mxu0 %v717
    %731 = vmatpush.bf16.msra.mxu0 %v716
    %732 = vmatpush.bf16.msra.mxu0 %v715
    %733 = vmatpush.bf16.msra.mxu0 %v714
    %734 = vmatpush.bf16.msra.mxu0 %v713
    %735 = vmatpush.bf16.msra.mxu0 %v712
    %736 = vmatmul.bf16.gmra.mxu0 %v656
    %v737 = vpop.f32.mrf.mxu0
    %v738 = vadd.f32 %v678, %v737
    %v739 = vpop.f32.mrf.mxu0
    %v740 = vadd.f32 %v678, %v739
    %741 = vmatmul.bf16.gmra.mxu0 %v657
    %v742 = vpop.f32.mrf.mxu0
    %v743 = vadd.f32 %v678, %v742
    %v744 = vpop.f32.mrf.mxu0
    %v745 = vadd.f32 %v678, %v744
    %746 = vdwg.mxu0
    %v747 = vmax.f32 %v738, 0.0
    %v748 = vmax.f32 %v740, 0.0
    %v749 = vmax.f32 %v743, 0.0
    %v750 = vmax.f32 %v745, 0.0
    %v751 = vpack.c.bf16 %v748, %v747
    %v752 = vpack.c.bf16 %v750, %v749
    %s753 = scalar_lea.vmem [#allocation2], 448
    %v754 = vld [vmem:[%s753] sm:$0xf]
    %v755 = vld [vmem:[%s753 + $0x4] sm:$0xf]
    %v756 = vld [vmem:[%s753 + $0x8] sm:$0xf]
    %v757 = vld [vmem:[%s753 + $0xc] sm:$0xf]
    %v758 = vld [vmem:[%s753 + $0x10] sm:$0xf]
    %v759 = vld [vmem:[%s753 + $0x14] sm:$0xf]
    %v760 = vld [vmem:[%s753 + $0x18] sm:$0xf]
    %v761 = vld [vmem:[%s753 + $0x1c] sm:$0xf]
    %v762 = vld [vmem:[%s753 + $0x20] sm:$0xf]
    %v763 = vld [vmem:[%s753 + $0x24] sm:$0xf]
    %v764 = vld [vmem:[%s753 + $0x28] sm:$0xf]
    %v765 = vld [vmem:[%s753 + $0x2c] sm:$0xf]
    %v766 = vld [vmem:[%s753 + $0x30] sm:$0xf]
    %v767 = vld [vmem:[%s753 + $0x34] sm:$0xf]
    %v768 = vld [vmem:[%s753 + $0x38] sm:$0xf]
    %v769 = vld [vmem:[%s753 + $0x3c] sm:$0xf]
    %s770 = scalar_lea.vmem %s4, 7
    %v771 = vld [vmem:[%s770] sm:$0x1]
    %v773 = vperm.slane %v771, 0
    %v791 = vunpack.c.l.b16 %v754
    %v792 = vunpack.c.l.b16 %v755
    %v793 = vunpack.c.l.b16 %v756
    %v794 = vunpack.c.l.b16 %v757
    %v795 = vunpack.c.l.b16 %v758
    %v796 = vunpack.c.l.b16 %v759
    %v797 = vunpack.c.l.b16 %v760
    %v798 = vunpack.c.l.b16 %v761
    %v799 = vunpack.c.l.b16 %v762
    %v800 = vunpack.c.l.b16 %v763
    %v801 = vunpack.c.l.b16 %v764
    %v802 = vunpack.c.l.b16 %v765
    %v803 = vunpack.c.l.b16 %v766
    %v804 = vunpack.c.l.b16 %v767
    %v805 = vunpack.c.l.b16 %v768
    %v806 = vunpack.c.l.b16 %v769
    %v807 = vpack.c.b16 %v792, %v791
    %v808 = vpack.c.b16 %v794, %v793
    %v809 = vpack.c.b16 %v796, %v795
    %v810 = vpack.c.b16 %v798, %v797
    %v811 = vpack.c.b16 %v800, %v799
    %v812 = vpack.c.b16 %v802, %v801
    %v813 = vpack.c.b16 %v804, %v803
    %v814 = vpack.c.b16 %v806, %v805
    %823 = vmatpush.bf16.msra.mxu0 %v814
    %824 = vmatpush.bf16.msra.mxu0 %v813
    %825 = vmatpush.bf16.msra.mxu0 %v812
    %826 = vmatpush.bf16.msra.mxu0 %v811
    %827 = vmatpush.bf16.msra.mxu0 %v810
    %828 = vmatpush.bf16.msra.mxu0 %v809
    %829 = vmatpush.bf16.msra.mxu0 %v808
    %830 = vmatpush.bf16.msra.mxu0 %v807
    %831 = vmatmul.bf16.gmra.mxu0 %v751
    %v832 = vpop.f32.mrf.mxu0
    %v833 = vadd.f32 %v773, %v832
    %v834 = vpop.f32.mrf.mxu0
    %v835 = vadd.f32 %v773, %v834
    %836 = vmatmul.bf16.gmra.mxu0 %v752
    %v837 = vpop.f32.mrf.mxu0
    %v838 = vadd.f32 %v773, %v837
    %v839 = vpop.f32.mrf.mxu0
    %v840 = vadd.f32 %v773, %v839
    %841 = vdwg.mxu0
    %v842 = vmax.f32 %v833, 0.0
    %v843 = vmax.f32 %v835, 0.0
    %v844 = vmax.f32 %v838, 0.0
    %v845 = vmax.f32 %v840, 0.0
    %v846 = vpack.c.bf16 %v843, %v842
    %v847 = vpack.c.bf16 %v845, %v844
    %s848 = scalar_lea.vmem [#allocation2], 512
    %v849 = vld [vmem:[%s848] sm:$0xf]
    %v850 = vld [vmem:[%s848 + $0x4] sm:$0xf]
    %v851 = vld [vmem:[%s848 + $0x8] sm:$0xf]
    %v852 = vld [vmem:[%s848 + $0xc] sm:$0xf]
    %v853 = vld [vmem:[%s848 + $0x10] sm:$0xf]
    %v854 = vld [vmem:[%s848 + $0x14] sm:$0xf]
    %v855 = vld [vmem:[%s848 + $0x18] sm:$0xf]
    %v856 = vld [vmem:[%s848 + $0x1c] sm:$0xf]
    %v857 = vld [vmem:[%s848 + $0x20] sm:$0xf]
    %v858 = vld [vmem:[%s848 + $0x24] sm:$0xf]
    %v859 = vld [vmem:[%s848 + $0x28] sm:$0xf]
    %v860 = vld [vmem:[%s848 + $0x2c] sm:$0xf]
    %v861 = vld [vmem:[%s848 + $0x30] sm:$0xf]
    %v862 = vld [vmem:[%s848 + $0x34] sm:$0xf]
    %v863 = vld [vmem:[%s848 + $0x38] sm:$0xf]
    %v864 = vld [vmem:[%s848 + $0x3c] sm:$0xf]
    %s865 = scalar_lea.vmem %s4, 8
    %v866 = vld [vmem:[%s865] sm:$0x1]
    %v868 = vperm.slane %v866, 0
    %v886 = vunpack.c.l.b16 %v849
    %v887 = vunpack.c.l.b16 %v850
    %v888 = vunpack.c.l.b16 %v851
    %v889 = vunpack.c.l.b16 %v852
    %v890 = vunpack.c.l.b16 %v853
    %v891 = vunpack.c.l.b16 %v854
    %v892 = vunpack.c.l.b16 %v855
    %v893 = vunpack.c.l.b16 %v856
    %v894 = vunpack.c.l.b16 %v857
    %v895 = vunpack.c.l.b16 %v858
    %v896 = vunpack.c.l.b16 %v859
    %v897 = vunpack.c.l.b16 %v860
    %v898 = vunpack.c.l.b16 %v861
    %v899 = vunpack.c.l.b16 %v862
    %v900 = vunpack.c.l.b16 %v863
    %v901 = vunpack.c.l.b16 %v864
    %v902 = vpack.c.b16 %v887, %v886
    %v903 = vpack.c.b16 %v889, %v888
    %v904 = vpack.c.b16 %v891, %v890
    %v905 = vpack.c.b16 %v893, %v892
    %v906 = vpack.c.b16 %v895, %v894
    %v907 = vpack.c.b16 %v897, %v896
    %v908 = vpack.c.b16 %v899, %v898
    %v909 = vpack.c.b16 %v901, %v900
    %918 = vmatpush.bf16.msra.mxu0 %v909
    %919 = vmatpush.bf16.msra.mxu0 %v908
    %920 = vmatpush.bf16.msra.mxu0 %v907
    %921 = vmatpush.bf16.msra.mxu0 %v906
    %922 = vmatpush.bf16.msra.mxu0 %v905
    %923 = vmatpush.bf16.msra.mxu0 %v904
    %924 = vmatpush.bf16.msra.mxu0 %v903
    %925 = vmatpush.bf16.msra.mxu0 %v902
    %926 = vmatmul.bf16.gmra.mxu0 %v846
    %v927 = vpop.f32.mrf.mxu0
    %v928 = vadd.f32 %v868, %v927
    %v929 = vpop.f32.mrf.mxu0
    %v930 = vadd.f32 %v868, %v929
    %931 = vmatmul.bf16.gmra.mxu0 %v847
    %v932 = vpop.f32.mrf.mxu0
    %v933 = vadd.f32 %v868, %v932
    %v934 = vpop.f32.mrf.mxu0
    %v935 = vadd.f32 %v868, %v934
    %936 = vdwg.mxu0
    %v937 = vmax.f32 %v928, 0.0
    %v938 = vmax.f32 %v930, 0.0
    %v939 = vmax.f32 %v933, 0.0
    %v940 = vmax.f32 %v935, 0.0
    %v941 = vpack.c.bf16 %v938, %v937
    %v942 = vpack.c.bf16 %v940, %v939
    %s943 = scalar_lea.vmem [#allocation2], 576
    %v944 = vld [vmem:[%s943] sm:$0xf]
    %v945 = vld [vmem:[%s943 + $0x4] sm:$0xf]
    %v946 = vld [vmem:[%s943 + $0x8] sm:$0xf]
    %v947 = vld [vmem:[%s943 + $0xc] sm:$0xf]
    %v948 = vld [vmem:[%s943 + $0x10] sm:$0xf]
    %v949 = vld [vmem:[%s943 + $0x14] sm:$0xf]
    %v950 = vld [vmem:[%s943 + $0x18] sm:$0xf]
    %v951 = vld [vmem:[%s943 + $0x1c] sm:$0xf]
    %v952 = vld [vmem:[%s943 + $0x20] sm:$0xf]
    %v953 = vld [vmem:[%s943 + $0x24] sm:$0xf]
    %v954 = vld [vmem:[%s943 + $0x28] sm:$0xf]
    %v955 = vld [vmem:[%s943 + $0x2c] sm:$0xf]
    %v956 = vld [vmem:[%s943 + $0x30] sm:$0xf]
    %v957 = vld [vmem:[%s943 + $0x34] sm:$0xf]
    %v958 = vld [vmem:[%s943 + $0x38] sm:$0xf]
    %v959 = vld [vmem:[%s943 + $0x3c] sm:$0xf]
    %s960 = scalar_lea.vmem %s4, 9
    %v961 = vld [vmem:[%s960] sm:$0x1]
    %v963 = vperm.slane %v961, 0
    %v981 = vunpack.c.l.b16 %v944
    %v982 = vunpack.c.l.b16 %v945
    %v983 = vunpack.c.l.b16 %v946
    %v984 = vunpack.c.l.b16 %v947
    %v985 = vunpack.c.l.b16 %v948
    %v986 = vunpack.c.l.b16 %v949
    %v987 = vunpack.c.l.b16 %v950
    %v988 = vunpack.c.l.b16 %v951
    %v989 = vunpack.c.l.b16 %v952
    %v990 = vunpack.c.l.b16 %v953
    %v991 = vunpack.c.l.b16 %v954
    %v992 = vunpack.c.l.b16 %v955
    %v993 = vunpack.c.l.b16 %v956
    %v994 = vunpack.c.l.b16 %v957
    %v995 = vunpack.c.l.b16 %v958
    %v996 = vunpack.c.l.b16 %v959
    %v997 = vpack.c.b16 %v982, %v981
    %v998 = vpack.c.b16 %v984, %v983
    %v999 = vpack.c.b16 %v986, %v985
    %v1000 = vpack.c.b16 %v988, %v987
    %v1001 = vpack.c.b16 %v990, %v989
    %v1002 = vpack.c.b16 %v992, %v991
    %v1003 = vpack.c.b16 %v994, %v993
    %v1004 = vpack.c.b16 %v996, %v995
    %1013 = vmatpush.bf16.msra.mxu0 %v1004
    %1014 = vmatpush.bf16.msra.mxu0 %v1003
    %1015 = vmatpush.bf16.msra.mxu0 %v1002
    %1016 = vmatpush.bf16.msra.mxu0 %v1001
    %1017 = vmatpush.bf16.msra.mxu0 %v1000
    %1018 = vmatpush.bf16.msra.mxu0 %v999
    %1019 = vmatpush.bf16.msra.mxu0 %v998
    %1020 = vmatpush.bf16.msra.mxu0 %v997
    %1021 = vmatmul.bf16.gmra.mxu0 %v941
    %v1022 = vpop.f32.mrf.mxu0
    %v1023 = vadd.f32 %v963, %v1022
    %v1024 = vpop.f32.mrf.mxu0
    %v1025 = vadd.f32 %v963, %v1024
    %1026 = vmatmul.bf16.gmra.mxu0 %v942
    %v1027 = vpop.f32.mrf.mxu0
    %v1028 = vadd.f32 %v963, %v1027
    %v1029 = vpop.f32.mrf.mxu0
    %v1030 = vadd.f32 %v963, %v1029
    %1031 = vdwg.mxu0
    %v1032 = vmax.f32 %v1023, 0.0
    %v1033 = vmax.f32 %v1025, 0.0
    %v1034 = vmax.f32 %v1028, 0.0
    %v1035 = vmax.f32 %v1030, 0.0
    %v1036 = vpack.c.bf16 %v1033, %v1032
    %v1037 = vpack.c.bf16 %v1035, %v1034
    %v1038 = vld [vmem:[%s5] sm:$0xf]
    %v1039 = vld [vmem:[%s5 + $0x4] sm:$0xf]
    %v1040 = vld [vmem:[%s5 + $0x8] sm:$0xf]
    %v1041 = vld [vmem:[%s5 + $0xc] sm:$0xf]
    %v1042 = vld [vmem:[%s5 + $0x10] sm:$0xf]
    %v1043 = vld [vmem:[%s5 + $0x14] sm:$0xf]
    %v1044 = vld [vmem:[%s5 + $0x18] sm:$0xf]
    %v1045 = vld [vmem:[%s5 + $0x1c] sm:$0xf]
    %v1046 = vld [vmem:[%s5 + $0x20] sm:$0xf]
    %v1047 = vld [vmem:[%s5 + $0x24] sm:$0xf]
    %v1048 = vld [vmem:[%s5 + $0x28] sm:$0xf]
    %v1049 = vld [vmem:[%s5 + $0x2c] sm:$0xf]
    %v1050 = vld [vmem:[%s5 + $0x30] sm:$0xf]
    %v1051 = vld [vmem:[%s5 + $0x34] sm:$0xf]
    %v1052 = vld [vmem:[%s5 + $0x38] sm:$0xf]
    %v1053 = vld [vmem:[%s5 + $0x3c] sm:$0xf]
    %v1054 = vld [vmem:[%s6] sm:$0x1]
    %v1056 = vperm.slane %v1054, 0
    %v1074 = vunpack.c.l.b16 %v1038
    %v1075 = vunpack.c.l.b16 %v1039
    %v1076 = vunpack.c.l.b16 %v1040
    %v1077 = vunpack.c.l.b16 %v1041
    %v1078 = vunpack.c.l.b16 %v1042
    %v1079 = vunpack.c.l.b16 %v1043
    %v1080 = vunpack.c.l.b16 %v1044
    %v1081 = vunpack.c.l.b16 %v1045
    %v1082 = vunpack.c.l.b16 %v1046
    %v1083 = vunpack.c.l.b16 %v1047
    %v1084 = vunpack.c.l.b16 %v1048
    %v1085 = vunpack.c.l.b16 %v1049
    %v1086 = vunpack.c.l.b16 %v1050
    %v1087 = vunpack.c.l.b16 %v1051
    %v1088 = vunpack.c.l.b16 %v1052
    %v1089 = vunpack.c.l.b16 %v1053
    %v1090 = vpack.c.b16 %v1075, %v1074
    %v1091 = vpack.c.b16 %v1077, %v1076
    %v1092 = vpack.c.b16 %v1079, %v1078
    %v1093 = vpack.c.b16 %v1081, %v1080
    %v1094 = vpack.c.b16 %v1083, %v1082
    %v1095 = vpack.c.b16 %v1085, %v1084
    %v1096 = vpack.c.b16 %v1087, %v1086
    %v1097 = vpack.c.b16 %v1089, %v1088
    %1106 = vmatpush.bf16.msra.mxu0 %v1097
    %1107 = vmatpush.bf16.msra.mxu0 %v1096
    %1108 = vmatpush.bf16.msra.mxu0 %v1095
    %1109 = vmatpush.bf16.msra.mxu0 %v1094
    %1110 = vmatpush.bf16.msra.mxu0 %v1093
    %1111 = vmatpush.bf16.msra.mxu0 %v1092
    %1112 = vmatpush.bf16.msra.mxu0 %v1091
    %1113 = vmatpush.bf16.msra.mxu0 %v1090
    %1114 = vmatmul.bf16.gmra.mxu0 %v1036
    %v1115 = vpop.f32.mrf.mxu0
    %v1116 = vadd.f32 %v1056, %v1115
    %v1117 = vpop.f32.mrf.mxu0
    %v1118 = vadd.f32 %v1056, %v1117
    %1119 = vmatmul.bf16.gmra.mxu0 %v1037
    %v1120 = vpop.f32.mrf.mxu0
    %v1121 = vadd.f32 %v1056, %v1120
    %v1122 = vpop.f32.mrf.mxu0
    %v1123 = vadd.f32 %v1056, %v1122
    %1124 = vdwg.mxu0
    %1125 = vst [vmem:[%s7] sm:$0xff] %v1116
    %1126 = vst [vmem:[%s7 + $0x8] sm:$0xff] %v1118
    %1127 = vst [vmem:[%s7 + $0x10] sm:$0xff] %v1121
    %1128 = vst [vmem:[%s7 + $0x18] sm:$0xff] %v1123
    // Predicated region
    $region34: #{pinn_forward.1} parent=1 // pred_check
      _
    $region35: #{pinn_forward.1} parent=1 // pred_check_branch
      %1130 = sbr.rel (0) target = $region37
    $region36: #{pinn_forward.1} parent=1 // pred_region
      _
    $region37: #{pinn_forward.1} parent=1 // pred_fallthru
      _
    // Predicated region
    $region38: #{pinn_forward.1} parent=1 // pred_check
      _
    $region39: #{pinn_forward.1} parent=1 // pred_check_branch
      %1132 = sbr.rel (0) target = $region41
    $region40: #{pinn_forward.1} parent=1 // pred_region
      _
    $region41: #{pinn_forward.1} parent=1 // pred_fallthru
      _
    %1133 = vsyncpa [#allocation3], 1

</llo_original>
